<compile_context>
chip_gen: v6e
topology: v6e:2x2x1
jax: 0.10.0
libtpu: 0.0.40
codegen_flags: <defaults>
</compile_context>

<pallas_src>
import jax
import jax.numpy as jnp
from jax.experimental import pallas as pl
from jax.experimental.pallas import tpu as pltpu

_LANE = 128
_TARGET_BLOCK_BYTES = 8 * 1024 * 1024   # ~8 MiB/block (review: 4-8 MiB sweet spot)
_VMEM_LIMIT_BYTES = 48 * 1024 * 1024    # 2 arrays x 2 buffers x 8 MiB + headroom, <= v7x 64 MiB


def _normalize_kernel(mean_ref, inv_std_ref, x_ref, o_ref):
    # mean / 1/std are full (C,) f32 arrays in SMEM; pick this channel's scalars.
    c = pl.program_id(1)
    m = mean_ref[c]
    inv_s = inv_std_ref[c]
    # x_ref block: (bn, rows_per_block, 128) lane-dense tile -> pure VPU elementwise.
    o_ref[...] = ((x_ref[...] - m) * inv_s).astype(o_ref.dtype)


def _sublane(itemsize):
    # Sub-32-bit dtypes pack along sublanes: f32 -> 8, bf16 -> 16, int8/fp8 -> 32.
    return 8 * max(1, 4 // itemsize)


def normalize(x, mean, std, *, inplace=False):
    """(x - mean[c]) / std[c] per channel, NCHW layout (matches PyTorch Normalize)."""
    N, C, H, W = x.shape
    L = H * W
    mean = jnp.asarray(mean, dtype=jnp.float32)
    inv_std = 1.0 / jnp.asarray(std, dtype=jnp.float32)  # tiny host-side op
    assert mean.shape == (C,) and inv_std.shape == (C,)

    itemsize = jnp.dtype(x.dtype).itemsize
    sub = _sublane(itemsize)

    # Lane-dense (rows, 128) view of each contiguous channel plane.  Rare
    # non-128-divisible sizes (e.g. 299x299) get padded to a lane multiple so
    # stores stay full unmasked vst (costs one extra pad copy, avoids the
    # 1-sublane masked-store layout).
    padded = (L % _LANE) != 0
    if padded:
        L_pad = pl.cdiv(L, _LANE) * _LANE
        xr = jnp.pad(x.reshape(N, C, L), ((0, 0), (0, 0), (0, L_pad - L)))
    else:
        L_pad = L
        xr = x.reshape(N, C, L)
    rows, cols = L_pad // _LANE, _LANE
    xr = xr.reshape(N, C, rows, cols)

    plane_bytes = rows * cols * itemsize
    if plane_bytes >= _TARGET_BLOCK_BYTES:
        # A single channel plane already fills the target block: tile its rows.
        bn = 1
        rpb = max(1, _TARGET_BLOCK_BYTES // (cols * itemsize))
        rpb = max(sub, (rpb // sub) * sub)   # sublane-aligned for this dtype
        rpb = min(rpb, rows)
    else:
        # Small planes: span the batch axis for a fixed channel (shared mean/std).
        rpb = rows                            # full row extent: always legal
        bn = min(N, max(1, _TARGET_BLOCK_BYTES // plane_bytes))

    grid = (pl.cdiv(N, bn), C, pl.cdiv(rows, rpb))
    block = (bn, None, rpb, cols)             # C squeezed -> 3D kernel ref
    idx = lambda nb, c, r: (nb, c, r, 0)

    total = N * C * L
    cost = pl.CostEstimate(
        flops=2 * total,
        transcendentals=0,
        bytes_accessed=2 * total * itemsize,
    )

    out = pl.pallas_call(
        _normalize_kernel,
        out_shape=jax.ShapeDtypeStruct((N, C, rows, cols), x.dtype),
        grid=grid,
        in_specs=[
            pl.BlockSpec(memory_space=pltpu.SMEM),  # mean,  (C,)
            pl.BlockSpec(memory_space=pltpu.SMEM),  # 1/std, (C,)
            pl.BlockSpec(block, idx),
        ],
        out_specs=pl.BlockSpec(block, idx),
        compiler_params=pltpu.CompilerParams(
            dimension_semantics=("parallel", "parallel", "parallel"),
            vmem_limit_bytes=_VMEM_LIMIT_BYTES,
        ),
        cost_estimate=cost,
        input_output_aliases=({2: 0} if inplace else {}),
    )(mean, inv_std, xr)

    if padded:
        out = out.reshape(N, C, L_pad)[:, :, :L]
    return out.reshape(N, C, H, W)


if __name__ == "__main__":
    # ImageNet 'torch' normalization constants (module defaults) -> 3 channels.
    mean = [0.485, 0.456, 0.406]
    std = [0.229, 0.224, 0.225]

    key = jax.random.PRNGKey(0)

    # Cover both tail paths: L % 128 == 0 (16x16) and L % 128 != 0 (15x15, padded).
    for (H, W) in [(16, 16), (15, 15)]:
        x = jax.random.uniform(
            jax.random.fold_in(key, H), (2, 3, H, W), dtype=jnp.float32)
        out = jax.block_until_ready(normalize(x, mean, std))

        # Pure-JAX reference (mirrors the PyTorch per-channel loop).
        mean_a = jnp.asarray(mean, jnp.float32).reshape(1, 3, 1, 1)
        std_a = jnp.asarray(std, jnp.float32).reshape(1, 3, 1, 1)
        ref = (x - mean_a) / std_a
        assert out.shape == x.shape
        assert jnp.allclose(out, ref, atol=1e-6, rtol=1e-5)

    print("KERNEL_OK")
</pallas_src>

<mosaic_0001>
module attributes {stable_mosaic.version = 11 : i64} {
  func.func @_normalize_kernel(%arg0: i32, %arg1: i32, %arg2: i32, %arg3: memref<3xf32, #tpu.memory_space<smem>>, %arg4: memref<3xf32, #tpu.memory_space<smem>>, %arg5: memref<2x1x2x128xf32, #tpu.memory_space<vmem>>, %arg6: memref<2x1x2x128xf32, #tpu.memory_space<vmem>>) attributes {dimension_semantics = [#tpu.dimension_semantics<parallel>, #tpu.dimension_semantics<parallel>, #tpu.dimension_semantics<parallel>], iteration_bounds = array<i64: 1, 3, 1>, scalar_prefetch = 0 : i64, scratch_operands = 0 : i64, tpu.core_type = #tpu.core_type<tc>, window_params = [{transform_indices = @transform_0, window_bounds = array<i64: 3>}, {transform_indices = @transform_1, window_bounds = array<i64: 3>}, {transform_indices = @transform_2, window_bounds = array<i64: 2, 1, 2, 128>}, {transform_indices = @transform_3, window_bounds = array<i64: 2, 1, 2, 128>}]} {
    %0 = arith.index_cast %arg1 : i32 to index
    %1 = memref.load %arg3[%0] : memref<3xf32, #tpu.memory_space<smem>>
    %2 = arith.index_cast %arg1 : i32 to index
    %3 = memref.load %arg4[%2] : memref<3xf32, #tpu.memory_space<smem>>
    %c0 = arith.constant 0 : index
    %c0_0 = arith.constant 0 : index
    %c0_1 = arith.constant 0 : index
    %c0_2 = arith.constant 0 : index
    %4 = vector.load %arg5[%c0, %c0_0, %c0_1, %c0_2] : memref<2x1x2x128xf32, #tpu.memory_space<vmem>>, vector<2x1x2x128xf32>
    %5 = vector.shape_cast %4 : vector<2x1x2x128xf32> to vector<2x2x128xf32>
    %6 = vector.broadcast %1 : f32 to vector<2x2x128xf32>
    %7 = arith.subf %5, %6 : vector<2x2x128xf32>
    %8 = vector.broadcast %3 : f32 to vector<2x2x128xf32>
    %9 = arith.mulf %7, %8 : vector<2x2x128xf32>
    %c0_3 = arith.constant 0 : index
    %c0_4 = arith.constant 0 : index
    %c0_5 = arith.constant 0 : index
    %c0_6 = arith.constant 0 : index
    %10 = vector.load %arg6[%c0_3, %c0_4, %c0_5, %c0_6] : memref<2x1x2x128xf32, #tpu.memory_space<vmem>>, vector<2x1x2x128xf32>
    %11 = vector.shape_cast %10 : vector<2x1x2x128xf32> to vector<2x2x128xf32>
    %12 = vector.shape_cast %9 : vector<2x2x128xf32> to vector<2x1x2x128xf32>
    tpu.vector_store %arg6[%c0_3, %c0_4, %c0_5, %c0_6], %12 {strides = array<i32>} : memref<2x1x2x128xf32, #tpu.memory_space<vmem>>, vector<2x1x2x128xf32>,
    return
  }
  func.func @transform_0(%arg0: i32, %arg1: i32, %arg2: i32) -> i32 {
    %c0_i32 = arith.constant 0 : i32
    %c0_i32_0 = arith.constant 0 : i32
    return %c0_i32 : i32
  }
  func.func @transform_1(%arg0: i32, %arg1: i32, %arg2: i32) -> i32 {
    %c0_i32 = arith.constant 0 : i32
    %c0_i32_0 = arith.constant 0 : i32
    return %c0_i32 : i32
  }
  func.func @transform_2(%arg0: i32, %arg1: i32, %arg2: i32) -> (i32, i32, i32, i32) {
    %c0_i32 = arith.constant 0 : i32
    %c0_i32_0 = arith.constant 0 : i32
    return %arg0, %arg1, %arg2, %c0_i32 : i32, i32, i32, i32
  }
  func.func @transform_3(%arg0: i32, %arg1: i32, %arg2: i32) -> (i32, i32, i32, i32) {
    %c0_i32 = arith.constant 0 : i32
    %c0_i32_0 = arith.constant 0 : i32
    return %arg0, %arg1, %arg2, %c0_i32 : i32, i32, i32, i32
  }
}

</mosaic_0001>

<llo_original>
// kernel: tpu_custom_call.1
$region0: #{tpu_custom_call.1}
  #allocation0 [shape = 'u32[]', space=smem, size = 0x4, offset = 0x4, fixed_abs, tag = 'smem constant byte address 0x4 - core index']
  #allocation1 [shape = 'u32[144,128]{1,0:T(1,128)}', space=vmem, size = 0x12000, scoped, tag = 'internal scratch']
  %s0 = inlined_call_operand.hbm [shape: f32[3], index: 0, kind: input, shape index: {}]
  %s1 = inlined_call_operand.vmem [shape: f32[3], index: 1, kind: input, shape index: {}]
  %s2 = inlined_call_operand.hbm [shape: f32[2,3,2,128], index: 2, kind: input, shape index: {}]
  %s3 = inlined_call_operand.hbm [shape: f32[2,3,2,128], index: 3, kind: output, shape index: {}]
  %s4 = sld [smem:[#allocation0]]
  $region57: #{tpu_custom_call.1} parent=0
    _
  %s6 = ssub.s32 1, %s4
  %s7 = scalar_select 0, %s6, %s4
  $region1: #{tpu_custom_call.1} parent=0
    #allocation2 [shape = 'u8[512]{0}', space=smem, size = 0x200, scoped, tag = 'input window, operand 0, single buffered']
    #allocation3 [shape = 's32[2]{0}', space=sflag, size = 0x8, scoped, tag = 'scoped memory for tpu_custom_call.1']
    #allocation4 [shape = 's32[2]{0}', space=sflag, size = 0x8, scoped, tag = 'scoped memory for tpu_custom_call.1']
    #allocation5 [shape = 's32[2]{0}', space=sflag, size = 0x8, scoped, tag = 'scoped memory for tpu_custom_call.1']
    #allocation6 [shape = 's32[2]{0}', space=sflag, size = 0x8, scoped, tag = 'scoped memory for tpu_custom_call.1']
    #allocation7 [shape = 'u8[512]{0}', space=smem, size = 0x200, scoped, tag = 'input window, operand 1, single buffered']
    #allocation8 [shape = 'u8[4096]{0}', space=vmem, size = 0x1000, scoped, tag = 'input window, operand 2']
    #allocation9 [shape = 'u8[4096]{0}', space=vmem, size = 0x1000, scoped, tag = 'output window, operand 0']
    %8 = vsyncpa [#allocation5], 0
    %9 = vsyncpa [#allocation6], 0
    %10 = vsyncpa [#allocation3], 0
    %s11 = scalar_lea.sflag [#allocation3], 1
    %12 = vsyncpa %s11, 0
    %13 = vsyncpa [#allocation4], 0
    %s14 = scalar_lea.sflag [#allocation4], 1
    %15 = vsyncpa %s14, 0
    loop: start=0, step=1, limit=5
    $region2: #{tpu_custom_call.1} parent=1 // loop_pre_header
      _
    $region3: #{tpu_custom_call.1} parent=1 // loop_header
      %s17 = sphi 0, %s21
      %p18 = scmp.ge.s32.totalorder %s17, 5
      %s24 = sphi 0, %s43
      %s25 = sphi 0, %s39
      %s26 = sphi 0, %s35
      %s27 = sphi 0, %s24
      %s28 = sphi 0, %s25
      %s29 = sphi 0, %s26
      %s30 = sphi 0, %s27
      %s31 = sphi 0, %s28
      %s32 = sphi 0, %s29
      %s44 = sphi 0, %s44
      %s46 = sphi 0, %s44
      %s47 = sphi 0, %s46
      %s61 = sphi 0, %s47
      %s65 = sphi 0, %s65
      %s67 = sphi 0, %s65
      %s68 = sphi 0, %s67
      %s82 = sphi 0, %s68
      %s92 = sphi 0, %s94
      %s95 = sphi 0, %s92
      %s96 = sphi 0, %s95
      %s112 = sphi 0, %s96
      %s122 = sphi 0, %s124
      %s125 = sphi 0, %s122
      %s126 = sphi 0, %s125
      %s142 = sphi 0, %s126
    $region4: #{tpu_custom_call.1} parent=1 // loop_header_branch
      %20 = sbr.rel (%p18) target = $region8
    $region5: #{tpu_custom_call.1} parent=1 // loop_body
      %s22 = ssub.s32 %s17, 1
      %s23 = ssub.s32 %s17, 2
      %s33 = sadd.s32 1, %s26
      %p34 = scmp.ge.s32.totalorder %s33, 1
      %s35 = scalar_select %p34, 0, %s33
      %s36 = sadd.s32 1, %s25
      %s37 = scalar_select %p34, %s36, %s25
      %p38 = scmp.ge.s32.totalorder %s37, 3
      %s39 = scalar_select %p38, 0, %s37
      %s40 = sadd.s32 1, %s24
      %s41 = scalar_select %p38, %s40, %s24
      %p42 = scmp.ge.s32.totalorder %s41, 1
      %s43 = scalar_select %p42, 0, %s41
      %s45 = sadd.s32 %s44, 1
      %p48 = scmp.eq.s32.totalorder %s17, 2
      %p49 = scmp.ne.s32.totalorder %s44, %s46
      %p50 = scmp.eq.s32.totalorder %s17, 0
      %p51 = por %p49, %p50
      %p52 = scmp.ne.s32.totalorder %s44, %s46
      %p53 = scmp.eq.s32.totalorder %s22, 2
      %p54 = por %p52, %p53
      %p55 = scmp.ne.s32.totalorder %s46, %s47
      %p56 = scmp.eq.s32.totalorder %s22, 0
      %p57 = por %p55, %p56
      %p58 = scmp.ne.s32.totalorder %s46, %s47
      %p59 = scmp.eq.s32.totalorder %s23, 2
      %p60 = por %p58, %p59
      %p62 = scmp.ne.s32.totalorder %s47, %s61
      %p63 = scmp.eq.s32.totalorder %s23, 0
      %p64 = por %p62, %p63
      %s66 = sadd.s32 %s65, 1
      %p69 = scmp.eq.s32.totalorder %s17, 2
      %p70 = scmp.ne.s32.totalorder %s65, %s67
      %p71 = scmp.eq.s32.totalorder %s17, 0
      %p72 = por %p70, %p71
      %p73 = scmp.ne.s32.totalorder %s65, %s67
      %p74 = scmp.eq.s32.totalorder %s22, 2
      %p75 = por %p73, %p74
      %p76 = scmp.ne.s32.totalorder %s67, %s68
      %p77 = scmp.eq.s32.totalorder %s22, 0
      %p78 = por %p76, %p77
      %p79 = scmp.ne.s32.totalorder %s67, %s68
      %p80 = scmp.eq.s32.totalorder %s23, 2
      %p81 = por %p79, %p80
      %p83 = scmp.ne.s32.totalorder %s68, %s82
      %p84 = scmp.eq.s32.totalorder %s23, 0
      %p85 = por %p83, %p84
      %s86 = ssub.s32 %s24, %s43
      %s87 = ssub.s32 %s25, %s39
      %s88 = sor.u32 %s86, %s87
      %s89 = ssub.s32 %s26, %s35
      %s90 = sor.u32 %s88, %s89
      %p91 = scmp.eq.s32.totalorder %s90, 0
      %s93 = sadd.s32 %s92, 1
      %s94 = scalar_select %p91, %s92, %s93
      %p97 = pneg %p91
      %p98 = scmp.eq.s32.totalorder %s17, 2
      %p99 = por %p97, %p98
      %p100 = scmp.ne.s32.totalorder %s92, %s95
      %p101 = scmp.eq.s32.totalorder %s17, 0
      %p102 = por %p100, %p101
      %p103 = scmp.ne.s32.totalorder %s92, %s95
      %p104 = scmp.eq.s32.totalorder %s22, 2
      %p105 = por %p103, %p104
      %p106 = scmp.ne.s32.totalorder %s95, %s96
      %p107 = scmp.eq.s32.totalorder %s22, 0
      %p108 = por %p106, %p107
      %p109 = scmp.ne.s32.totalorder %s95, %s96
      %p110 = scmp.eq.s32.totalorder %s23, 2
      %p111 = por %p109, %p110
      %p113 = scmp.ne.s32.totalorder %s96, %s112
      %p114 = scmp.eq.s32.totalorder %s23, 0
      %p115 = por %p113, %p114
      %s116 = ssub.s32 %s24, %s43
      %s117 = ssub.s32 %s25, %s39
      %s118 = sor.u32 %s116, %s117
      %s119 = ssub.s32 %s26, %s35
      %s120 = sor.u32 %s118, %s119
      %p121 = scmp.eq.s32.totalorder %s120, 0
      %s123 = sadd.s32 %s122, 1
      %s124 = scalar_select %p121, %s122, %s123
      %p127 = pneg %p121
      %p128 = scmp.eq.s32.totalorder %s17, 2
      %p129 = por %p127, %p128
      %p130 = scmp.ne.s32.totalorder %s122, %s125
      %p131 = scmp.eq.s32.totalorder %s17, 0
      %p132 = por %p130, %p131
      %p133 = scmp.ne.s32.totalorder %s122, %s125
      %p134 = scmp.eq.s32.totalorder %s22, 2
      %p135 = por %p133, %p134
      %p136 = scmp.ne.s32.totalorder %s125, %s126
      %p137 = scmp.eq.s32.totalorder %s22, 0
      %p138 = por %p136, %p137
      %p139 = scmp.ne.s32.totalorder %s125, %s126
      %p140 = scmp.eq.s32.totalorder %s23, 2
      %p141 = por %p139, %p140
      %p143 = scmp.ne.s32.totalorder %s126, %s142
      %p144 = scmp.eq.s32.totalorder %s23, 0
      %p145 = por %p143, %p144
      %p146 = scmp.le.s32.totalorder 1, %s17
      %p147 = scmp.lt.s32.totalorder %s17, 4
      %p148 = pnand %p146, %p147
      %p149 = pneg %p148
      // Predicated region
      $region9: #{tpu_custom_call.1} parent=5 // pred_check
        _
      $region10: #{tpu_custom_call.1} parent=5 // pred_check_branch
        %151 = sbr.rel (%p148) target = $region12
      $region11: #{tpu_custom_call.1} parent=5 // pred_region
        %s152 = ssub.s32 %s17, 1
        // Predicated region
        $region13: #{tpu_custom_call.1} parent=11 // pred_check
          %p153 = pneg %p57
        $region14: #{tpu_custom_call.1} parent=11 // pred_check_branch
          %155 = sbr.rel (%p153) target = $region16
        $region15: #{tpu_custom_call.1} parent=11 // pred_region
          %s157 = ssub.s32 16, 16
          %158 = vsyncadd [#allocation5], %s157
          %161 = dma.hbm_to_smem %s0, 16, [#allocation2], [#allocation5]
        $region16: #{tpu_custom_call.1} parent=11 // pred_fallthru
          _
        // Predicated region
        $region17: #{tpu_custom_call.1} parent=11 // pred_check
          %p162 = pneg %p78
        $region18: #{tpu_custom_call.1} parent=11 // pred_check_branch
          %164 = sbr.rel (%p162) target = $region20
        $region19: #{tpu_custom_call.1} parent=11 // pred_region
          %s166 = ssub.s32 16, 16
          %167 = vsyncadd [#allocation6], %s166
          %s169 = sshll.u32 %s1, 4
          %s170 = int_to_ptr.vmem [resolvable:$true] %s169
          %172 = dma.vmem_to_smem %s170, 16, [#allocation7], [#allocation6]
        $region20: #{tpu_custom_call.1} parent=11 // pred_fallthru
          _
      $region12: #{tpu_custom_call.1} parent=5 // pred_fallthru
        _
      %p173 = scmp.lt.s32.totalorder %s17, 3
      // Predicated region
      $region21: #{tpu_custom_call.1} parent=5 // pred_check
        %p174 = pneg %p173
      $region22: #{tpu_custom_call.1} parent=5 // pred_check_branch
        %176 = sbr.rel (%p174) target = $region24
      $region23: #{tpu_custom_call.1} parent=5 // pred_region
        // Predicated region
        $region25: #{tpu_custom_call.1} parent=23 // pred_check
          %p177 = pneg %p102
        $region26: #{tpu_custom_call.1} parent=23 // pred_check_branch
          %179 = sbr.rel (%p177) target = $region28
        $region27: #{tpu_custom_call.1} parent=23 // pred_region
          %s180 = sand.u32 %s92, 1
          %s181 = scalar_lea.sflag [#allocation3], %s180
          %s182 = sand.u32 %s92, 1
          %s183 = smul.addr %s182, 4
          %s184 = scalar_lea.vmem [#allocation8], %s183
          %s185 = smul.u32 2, %s24
          %s187 = ssub.s32 64, 64
          %188 = vsyncadd %s181, %s187
          %s189 = sadd.s32 %s26, %s25
          %s190 = smul.addr %s185, 3
          %s191 = sadd.s32 %s189, %s190
          %s192 = smul.addr %s191, 32
          %s193 = scalar_lea.hbm %s2, %s192
          %s194 = sshll.u32 %s184, 4
          %s195 = int_to_ptr.vmem [resolvable:$true] %s194
          %200 = dma.hbm_to_vmem [thread:$0]  %s193, 64, %s195, %s181, 96, 32, 2
        $region28: #{tpu_custom_call.1} parent=23 // pred_fallthru
          _
      $region24: #{tpu_custom_call.1} parent=5 // pred_fallthru
        _
      %p201 = scmp.le.s32.totalorder 1, %s17
      %p202 = scmp.lt.s32.totalorder %s17, 4
      %p203 = pnand %p201, %p202
      %p204 = pneg %p203
      // Predicated region
      $region29: #{tpu_custom_call.1} parent=5 // pred_check
        _
      $region30: #{tpu_custom_call.1} parent=5 // pred_check_branch
        %206 = sbr.rel (%p203) target = $region32
      $region31: #{tpu_custom_call.1} parent=5 // pred_region
        %s207 = ssub.s32 %s17, 1
        // Predicated region
        $region33: #{tpu_custom_call.1} parent=31 // pred_check
          %p208 = pneg %p57
        $region34: #{tpu_custom_call.1} parent=31 // pred_check_branch
          %210 = sbr.rel (%p208) target = $region36
        $region35: #{tpu_custom_call.1} parent=31 // pred_region
          %211 = dma.done [#allocation5], 16
        $region36: #{tpu_custom_call.1} parent=31 // pred_fallthru
          _
        // Predicated region
        $region37: #{tpu_custom_call.1} parent=31 // pred_check
          %p212 = pneg %p78
        $region38: #{tpu_custom_call.1} parent=31 // pred_check_branch
          %214 = sbr.rel (%p212) target = $region40
        $region39: #{tpu_custom_call.1} parent=31 // pred_region
          %215 = dma.done [#allocation6], 16
        $region40: #{tpu_custom_call.1} parent=31 // pred_fallthru
          _
        %s216 = sand.u32 %s95, 1
        %s217 = scalar_lea.sflag [#allocation3], %s216
        %s218 = sand.u32 %s95, 1
        %s219 = smul.addr %s218, 4
        %s220 = scalar_lea.vmem [#allocation8], %s219
        // Predicated region
        $region41: #{tpu_custom_call.1} parent=31 // pred_check
          %p221 = pneg %p108
        $region42: #{tpu_custom_call.1} parent=31 // pred_check_branch
          %223 = sbr.rel (%p221) target = $region44
        $region43: #{tpu_custom_call.1} parent=31 // pred_region
          %224 = dma.done %s217, 64
        $region44: #{tpu_custom_call.1} parent=31 // pred_fallthru
          _
        %225 = sfence
        %p226 = pneg %p57
        %p227 = pneg %p54
        %p228 = pneg %p78
        %p229 = pneg %p75
        %s230 = sand.u32 %s95, 1
        %s231 = scalar_lea.sflag [#allocation3], %s230
        %s232 = sand.u32 %s95, 1
        %s233 = smul.addr %s232, 4
        %s234 = scalar_lea.vmem [#allocation8], %s233
        %p235 = pneg %p108
        %p236 = pneg %p105
        %p237 = pneg %p138
        %p238 = pneg %p135
        %s239 = sand.u32 %s125, 1
        %s240 = scalar_lea.sflag [#allocation4], %s239
        %s241 = sand.u32 %s125, 1
        %s242 = smul.addr %s241, 4
        %s243 = scalar_lea.vmem [#allocation9], %s242
        %s244 = smul.u32 2, %s27
        %s245 = smul.u32 2, %s27
        %s246 = sld [smem:[#allocation2 + %s28]]
        %s247 = sld [smem:[#allocation7 + %s28]]
        %v248 = vld [vmem:[%s220] sm:$0x3]
        %v249 = vld [vmem:[%s220 + $0x2] sm:$0x3]
        %v250 = vstv %s246
        %v251 = vsub.f32 %v248, %v250
        %v252 = vsub.f32 %v249, %v250
        %v253 = vstv %s247
        %v254 = vmul.f32 %v251, %v253
        %v255 = vmul.f32 %v252, %v253
        %256 = vst [vmem:[%s243] sm:$0x3] %v254
        %257 = vst [vmem:[%s243 + $0x2] sm:$0x3] %v255
        %s258 = sand.u32 %s125, 1
        %s259 = scalar_lea.sflag [#allocation4], %s258
        %s260 = sand.u32 %s125, 1
        %s261 = smul.addr %s260, 4
        %s262 = scalar_lea.vmem [#allocation9], %s261
        // Predicated region
        $region45: #{tpu_custom_call.1} parent=31 // pred_check
          %p263 = pneg %p135
        $region46: #{tpu_custom_call.1} parent=31 // pred_check_branch
          %265 = sbr.rel (%p263) target = $region48
        $region47: #{tpu_custom_call.1} parent=31 // pred_region
          %s266 = smul.u32 2, %s27
          %s268 = ssub.s32 64, 64
          %269 = vsyncadd %s259, %s268
          %s270 = sadd.s32 %s29, %s28
          %s271 = smul.addr %s266, 3
          %s272 = sadd.s32 %s270, %s271
          %s273 = smul.addr %s272, 32
          %s274 = scalar_lea.hbm %s3, %s273
          %s275 = sshll.u32 %s262, 4
          %s276 = int_to_ptr.vmem [resolvable:$true] %s275
          %281 = dma.vmem_to_hbm [thread:$0]  %s276, 64, %s274, %s259, 32, 96, 2
        $region48: #{tpu_custom_call.1} parent=31 // pred_fallthru
          _
      $region32: #{tpu_custom_call.1} parent=5 // pred_fallthru
        _
      %p282 = scmp.le.s32.totalorder 2, %s17
      // Predicated region
      $region49: #{tpu_custom_call.1} parent=5 // pred_check
        %p283 = pneg %p282
      $region50: #{tpu_custom_call.1} parent=5 // pred_check_branch
        %285 = sbr.rel (%p283) target = $region52
      $region51: #{tpu_custom_call.1} parent=5 // pred_region
        %s286 = ssub.s32 %s17, 2
        // Predicated region
        $region53: #{tpu_custom_call.1} parent=51 // pred_check
          %p287 = pneg %p141
        $region54: #{tpu_custom_call.1} parent=51 // pred_check_branch
          %289 = sbr.rel (%p287) target = $region56
        $region55: #{tpu_custom_call.1} parent=51 // pred_region
          %s290 = sand.u32 %s126, 1
          %s291 = scalar_lea.sflag [#allocation4], %s290
          %s292 = sand.u32 %s126, 1
          %s293 = smul.addr %s292, 4
          %s294 = scalar_lea.vmem [#allocation9], %s293
          %295 = dma.done %s291, 64
        $region56: #{tpu_custom_call.1} parent=51 // pred_fallthru
          _
      $region52: #{tpu_custom_call.1} parent=5 // pred_fallthru
        _
    $region6: #{tpu_custom_call.1} parent=1 // loop_footer
      %s21 = sadd.s32 1, %s17
    $region7: #{tpu_custom_call.1} parent=1 // loop_footer_branch
      %16 = sbr.rel target = $region3
    $region8: #{tpu_custom_call.1} parent=1 // loop_exit
      _
    %296 = vsyncpa [#allocation3], 1
    %s297 = scalar_lea.sflag [#allocation3], 1
    %298 = vsyncpa %s297, 1
    %299 = vsyncpa [#allocation4], 1
    %s300 = scalar_lea.sflag [#allocation4], 1
    %301 = vsyncpa %s300, 1
    %302 = vsyncpa [#allocation5], 1
    %s303 = scalar_lea.sflag [#allocation5], 1
    %304 = vsyncpa %s303, 1
    %305 = vsyncpa [#allocation6], 1
    %s306 = scalar_lea.sflag [#allocation6], 1
    %307 = vsyncpa %s306, 1

</llo_original>
